<compile_context>
chip_gen: v5e
topology: v5e:2x2
jax: 0.10.0
libtpu: 0.0.40
codegen_flags: <defaults>
</compile_context>

<pallas_src>
import functools

import jax
import jax.numpy as jnp
from jax.experimental import pallas as pl
from jax.experimental.pallas import tpu as pltpu


def _round_up(x, m):
    return ((x + m - 1) // m) * m


def _upsample_kernel(x_ref, e_ref, w_ref, b_ref, o_ref):
    # x_ref: (1, Cin, th, W)   NCHW input tile
    # e_ref: (W, L)            0/1 spatial-scatter matrix, L = 4*W
    # w_ref: (Cin*Cout, L)     lane weights  weight[c, o, kh(l), kw(l)]
    # b_ref: (Cout, L)         bias rows (bias[o] broadcast over lanes)
    # o_ref: (1, Cout, th, L)  output tile; lane l = kh*2W + 2w + kw
    cin = x_ref.shape[1]
    cout = o_ref.shape[1]

    e = e_ref[...]
    # MXU: replicate each input pixel of row r into its 4 output lane slots.
    xe = [
        jnp.dot(x_ref[0, c], e, preferred_element_type=jnp.float32)
        for c in range(cin)
    ]
    # VPU: unrolled rank-1 channel mixing (Cin, Cout are tiny).
    for o in range(cout):
        acc = b_ref[pl.ds(o, 1), :]                                 # (1, L)
        for c in range(cin):
            acc = acc + xe[c] * w_ref[pl.ds(c * cout + o, 1), :]    # (th, L)
        o_ref[0, o] = acc.astype(o_ref.dtype)


@functools.partial(jax.jit, static_argnames=("tile_budget_bytes",))
def upsample_conv_transpose2d(x, weight, bias, *, tile_budget_bytes=4 * 1024 * 1024):
    """ConvTranspose2d(kernel_size=2, stride=2) forward, PyTorch semantics.

    x      : (N, Cin, H, W)  NCHW
    weight : (Cin, Cout, 2, 2)  (PyTorch ConvTranspose2d weight layout)
    bias   : (Cout,)
    returns: (N, Cout, 2H, 2W)  NCHW
    """
    N, Cin, H, W = x.shape
    Cout = weight.shape[1]
    L = 4 * W
    dtype = x.dtype

    # ---- tile selection: large multiple-of-8 H tiles under a VMEM budget ----
    bytes_per_row = (Cin * W + Cout * L) * x.dtype.itemsize   # in + out per H row
    th_cap = max(8, (tile_budget_bytes // max(bytes_per_row, 1)) // 8 * 8)
    th = min(th_cap, _round_up(H, 8))
    H_pad = _round_up(H, th)          # pad instead of the old tm=M fallback
    if H_pad != H:
        x = jnp.pad(x, ((0, 0), (0, 0), (0, H_pad - H), (0, 0)))

    # ---- tiny constant operands (grid-invariant, O(W*Cin*Cout) bytes) ----
    l_idx = jnp.arange(L)
    kh = l_idx // (2 * W)
    kw = l_idx % 2
    w_of_l = (l_idx % (2 * W)) // 2
    e_mat = (jnp.arange(W)[:, None] == w_of_l[None, :]).astype(dtype)       # (W, L)
    w_rows = weight[:, :, kh, kw].astype(dtype).reshape(Cin * Cout, L)      # (Cin*Cout, L)
    b_rows = jnp.broadcast_to(bias.astype(dtype)[:, None], (Cout, L))       # (Cout, L)

    grid = (N, H_pad // th)

    y = pl.pallas_call(
        _upsample_kernel,
        out_shape=jax.ShapeDtypeStruct((N, Cout, H_pad, L), dtype),
        grid_spec=pltpu.PrefetchScalarGridSpec(
            num_scalar_prefetch=0,
            grid=grid,
            in_specs=[
                pl.BlockSpec((1, Cin, th, W), lambda n, i: (n, 0, i, 0)),
                pl.BlockSpec((W, L), lambda n, i: (0, 0)),
                pl.BlockSpec((Cin * Cout, L), lambda n, i: (0, 0)),
                pl.BlockSpec((Cout, L), lambda n, i: (0, 0)),
            ],
            out_specs=pl.BlockSpec((1, Cout, th, L), lambda n, i: (n, 0, i, 0)),
        ),
        compiler_params=pltpu.CompilerParams(
            dimension_semantics=("parallel", "parallel"),
            vmem_limit_bytes=32 * 1024 * 1024,   # explicit: v5e default is 16 MiB
        ),
    )(x, e_mat, w_rows, b_rows)

    if H_pad != H:
        y = y[:, :, :H, :]
    # (N, Cout, H, 4W) with lane order kh*2W + 2w + kw  ==  (N, Cout, 2H, 2W):
    # free, contiguous reshape — no transpose pass.
    return y.reshape(N, Cout, 2 * H, 2 * W)


def _reference(x_nchw, weight, bias):
    # Pure-JAX reference for ConvTranspose2d(k=2, s=2):
    # out[n, o, 2h+kh, 2w+kw] = sum_c x[n,c,h,w] * W[c,o,kh,kw] + b[o]
    N, Cin, H, W = x_nchw.shape
    Cout = weight.shape[1]
    y = jnp.einsum("nchw,cokl->nohkwl", x_nchw, weight)   # (N,Cout,H,2,W,2)
    y = y.reshape(N, Cout, 2 * H, 2 * W)
    return y + bias[None, :, None, None]


if __name__ == "__main__":
    # Module config consistent with upsample(in_channels=4, out_channels=4)
    N, Cin, Cout, H, W = 2, 4, 4, 16, 16

    key = jax.random.PRNGKey(0)
    kx, kw_key, kb = jax.random.split(key, 3)

    x = jax.random.normal(kx, (N, Cin, H, W), dtype=jnp.float32)
    weight = jax.random.normal(kw_key, (Cin, Cout, 2, 2), dtype=jnp.float32) * 0.1
    bias = jax.random.normal(kb, (Cout,), dtype=jnp.float32) * 0.1

    out = jax.block_until_ready(upsample_conv_transpose2d(x, weight, bias))

    ref = _reference(x, weight, bias)
    assert out.shape == (N, Cout, 2 * H, 2 * W), out.shape
    assert jnp.allclose(out, ref, atol=1e-5, rtol=1e-5), "mismatch vs reference"

    print("KERNEL_OK")
</pallas_src>

<mosaic_0001>
module attributes {stable_mosaic.version = 11 : i64} {
  func.func @_upsample_kernel(%arg0: i32, %arg1: i32, %arg2: memref<1x4x16x16xf32, #tpu.memory_space<vmem>>, %arg3: memref<16x64xf32, #tpu.memory_space<vmem>>, %arg4: memref<16x64xf32, #tpu.memory_space<vmem>>, %arg5: memref<4x64xf32, #tpu.memory_space<vmem>>, %arg6: memref<1x4x16x64xf32, #tpu.memory_space<vmem>>) attributes {dimension_semantics = [#tpu.dimension_semantics<parallel>, #tpu.dimension_semantics<parallel>], iteration_bounds = array<i64: 2, 1>, scalar_prefetch = 0 : i64, scratch_operands = 0 : i64, tpu.core_type = #tpu.core_type<tc>, window_params = [{transform_indices = @transform_0, window_bounds = array<i64: 1, 4, 16, 16>}, {pipeline_mode = #tpu.pipeline_mode<synchronous>, transform_indices = @transform_1, window_bounds = array<i64: 16, 64>}, {pipeline_mode = #tpu.pipeline_mode<synchronous>, transform_indices = @transform_2, window_bounds = array<i64: 16, 64>}, {pipeline_mode = #tpu.pipeline_mode<synchronous>, transform_indices = @transform_3, window_bounds = array<i64: 4, 64>}, {transform_indices = @transform_4, window_bounds = array<i64: 1, 4, 16, 64>}]} {
    %c0 = arith.constant 0 : index
    %c0_0 = arith.constant 0 : index
    %0 = vector.load %arg3[%c0, %c0_0] : memref<16x64xf32, #tpu.memory_space<vmem>>, vector<16x64xf32>
    %c0_1 = arith.constant 0 : index
    %c0_2 = arith.constant 0 : index
    %c0_3 = arith.constant 0 : index
    %c0_4 = arith.constant 0 : index
    %1 = vector.load %arg2[%c0_1, %c0_2, %c0_3, %c0_4] : memref<1x4x16x16xf32, #tpu.memory_space<vmem>>, vector<1x1x16x16xf32>
    %2 = vector.shape_cast %1 : vector<1x1x16x16xf32> to vector<16x16xf32>
    %cst = arith.constant dense<0.000000e+00> : vector<16x64xf32>
    %3 = tpu.matmul %2, %0, %cst {dimension_numbers = #tpu.dot_dimension_numbers<[1], [0], [0], [1], [0, 0, 1, 1], [], []>} : vector<16x16xf32>, vector<16x64xf32>, vector<16x64xf32> -> vector<16x64xf32>
    %c0_5 = arith.constant 0 : index
    %c1 = arith.constant 1 : index
    %c0_6 = arith.constant 0 : index
    %c0_7 = arith.constant 0 : index
    %4 = vector.load %arg2[%c0_5, %c1, %c0_6, %c0_7] : memref<1x4x16x16xf32, #tpu.memory_space<vmem>>, vector<1x1x16x16xf32>
    %5 = vector.shape_cast %4 : vector<1x1x16x16xf32> to vector<16x16xf32>
    %cst_8 = arith.constant dense<0.000000e+00> : vector<16x64xf32>
    %6 = tpu.matmul %5, %0, %cst_8 {dimension_numbers = #tpu.dot_dimension_numbers<[1], [0], [0], [1], [0, 0, 1, 1], [], []>} : vector<16x16xf32>, vector<16x64xf32>, vector<16x64xf32> -> vector<16x64xf32>
    %c0_9 = arith.constant 0 : index
    %c2 = arith.constant 2 : index
    %c0_10 = arith.constant 0 : index
    %c0_11 = arith.constant 0 : index
    %7 = vector.load %arg2[%c0_9, %c2, %c0_10, %c0_11] : memref<1x4x16x16xf32, #tpu.memory_space<vmem>>, vector<1x1x16x16xf32>
    %8 = vector.shape_cast %7 : vector<1x1x16x16xf32> to vector<16x16xf32>
    %cst_12 = arith.constant dense<0.000000e+00> : vector<16x64xf32>
    %9 = tpu.matmul %8, %0, %cst_12 {dimension_numbers = #tpu.dot_dimension_numbers<[1], [0], [0], [1], [0, 0, 1, 1], [], []>} : vector<16x16xf32>, vector<16x64xf32>, vector<16x64xf32> -> vector<16x64xf32>
    %c0_13 = arith.constant 0 : index
    %c3 = arith.constant 3 : index
    %c0_14 = arith.constant 0 : index
    %c0_15 = arith.constant 0 : index
    %10 = vector.load %arg2[%c0_13, %c3, %c0_14, %c0_15] : memref<1x4x16x16xf32, #tpu.memory_space<vmem>>, vector<1x1x16x16xf32>
    %11 = vector.shape_cast %10 : vector<1x1x16x16xf32> to vector<16x16xf32>
    %cst_16 = arith.constant dense<0.000000e+00> : vector<16x64xf32>
    %12 = tpu.matmul %11, %0, %cst_16 {dimension_numbers = #tpu.dot_dimension_numbers<[1], [0], [0], [1], [0, 0, 1, 1], [], []>} : vector<16x16xf32>, vector<16x64xf32>, vector<16x64xf32> -> vector<16x64xf32>
    %c0_17 = arith.constant 0 : index
    %c0_18 = arith.constant 0 : index
    %13 = vector.load %arg5[%c0_17, %c0_18] : memref<4x64xf32, #tpu.memory_space<vmem>>, vector<1x64xf32>
    %c0_19 = arith.constant 0 : index
    %c0_20 = arith.constant 0 : index
    %14 = vector.load %arg4[%c0_19, %c0_20] : memref<16x64xf32, #tpu.memory_space<vmem>>, vector<1x64xf32>
    %15 = vector.broadcast %14 : vector<1x64xf32> to vector<16x64xf32>
    %16 = arith.mulf %3, %15 : vector<16x64xf32>
    %17 = vector.broadcast %13 : vector<1x64xf32> to vector<16x64xf32>
    %18 = arith.addf %17, %16 : vector<16x64xf32>
    %c4 = arith.constant 4 : index
    %c0_21 = arith.constant 0 : index
    %19 = vector.load %arg4[%c4, %c0_21] : memref<16x64xf32, #tpu.memory_space<vmem>>, vector<1x64xf32>
    %20 = vector.broadcast %19 : vector<1x64xf32> to vector<16x64xf32>
    %21 = arith.mulf %6, %20 : vector<16x64xf32>
    %22 = arith.addf %18, %21 : vector<16x64xf32>
    %c8 = arith.constant 8 : index
    %c0_22 = arith.constant 0 : index
    %23 = vector.load %arg4[%c8, %c0_22] : memref<16x64xf32, #tpu.memory_space<vmem>>, vector<1x64xf32>
    %24 = vector.broadcast %23 : vector<1x64xf32> to vector<16x64xf32>
    %25 = arith.mulf %9, %24 : vector<16x64xf32>
    %26 = arith.addf %22, %25 : vector<16x64xf32>
    %c12 = arith.constant 12 : index
    %c0_23 = arith.constant 0 : index
    %27 = vector.load %arg4[%c12, %c0_23] : memref<16x64xf32, #tpu.memory_space<vmem>>, vector<1x64xf32>
    %28 = vector.broadcast %27 : vector<1x64xf32> to vector<16x64xf32>
    %29 = arith.mulf %12, %28 : vector<16x64xf32>
    %30 = arith.addf %26, %29 : vector<16x64xf32>
    %c0_24 = arith.constant 0 : index
    %c0_25 = arith.constant 0 : index
    %c0_26 = arith.constant 0 : index
    %c0_27 = arith.constant 0 : index
    %31 = vector.load %arg6[%c0_24, %c0_25, %c0_26, %c0_27] : memref<1x4x16x64xf32, #tpu.memory_space<vmem>>, vector<1x1x16x64xf32>
    %32 = vector.shape_cast %31 : vector<1x1x16x64xf32> to vector<16x64xf32>
    %33 = vector.shape_cast %30 : vector<16x64xf32> to vector<1x1x16x64xf32>
    tpu.vector_store %arg6[%c0_24, %c0_25, %c0_26, %c0_27], %33 {strides = array<i32>} : memref<1x4x16x64xf32, #tpu.memory_space<vmem>>, vector<1x1x16x64xf32>,
    %c1_28 = arith.constant 1 : index
    %c0_29 = arith.constant 0 : index
    %34 = vector.load %arg5[%c1_28, %c0_29] : memref<4x64xf32, #tpu.memory_space<vmem>>, vector<1x64xf32>
    %c1_30 = arith.constant 1 : index
    %c0_31 = arith.constant 0 : index
    %35 = vector.load %arg4[%c1_30, %c0_31] : memref<16x64xf32, #tpu.memory_space<vmem>>, vector<1x64xf32>
    %36 = vector.broadcast %35 : vector<1x64xf32> to vector<16x64xf32>
    %37 = arith.mulf %3, %36 : vector<16x64xf32>
    %38 = vector.broadcast %34 : vector<1x64xf32> to vector<16x64xf32>
    %39 = arith.addf %38, %37 : vector<16x64xf32>
    %c5 = arith.constant 5 : index
    %c0_32 = arith.constant 0 : index
    %40 = vector.load %arg4[%c5, %c0_32] : memref<16x64xf32, #tpu.memory_space<vmem>>, vector<1x64xf32>
    %41 = vector.broadcast %40 : vector<1x64xf32> to vector<16x64xf32>
    %42 = arith.mulf %6, %41 : vector<16x64xf32>
    %43 = arith.addf %39, %42 : vector<16x64xf32>
    %c9 = arith.constant 9 : index
    %c0_33 = arith.constant 0 : index
    %44 = vector.load %arg4[%c9, %c0_33] : memref<16x64xf32, #tpu.memory_space<vmem>>, vector<1x64xf32>
    %45 = vector.broadcast %44 : vector<1x64xf32> to vector<16x64xf32>
    %46 = arith.mulf %9, %45 : vector<16x64xf32>
    %47 = arith.addf %43, %46 : vector<16x64xf32>
    %c13 = arith.constant 13 : index
    %c0_34 = arith.constant 0 : index
    %48 = vector.load %arg4[%c13, %c0_34] : memref<16x64xf32, #tpu.memory_space<vmem>>, vector<1x64xf32>
    %49 = vector.broadcast %48 : vector<1x64xf32> to vector<16x64xf32>
    %50 = arith.mulf %12, %49 : vector<16x64xf32>
    %51 = arith.addf %47, %50 : vector<16x64xf32>
    %c0_35 = arith.constant 0 : index
    %c1_36 = arith.constant 1 : index
    %c0_37 = arith.constant 0 : index
    %c0_38 = arith.constant 0 : index
    %52 = vector.load %arg6[%c0_35, %c1_36, %c0_37, %c0_38] : memref<1x4x16x64xf32, #tpu.memory_space<vmem>>, vector<1x1x16x64xf32>
    %53 = vector.shape_cast %52 : vector<1x1x16x64xf32> to vector<16x64xf32>
    %54 = vector.shape_cast %51 : vector<16x64xf32> to vector<1x1x16x64xf32>
    tpu.vector_store %arg6[%c0_35, %c1_36, %c0_37, %c0_38], %54 {strides = array<i32>} : memref<1x4x16x64xf32, #tpu.memory_space<vmem>>, vector<1x1x16x64xf32>,
    %c2_39 = arith.constant 2 : index
    %c0_40 = arith.constant 0 : index
    %55 = vector.load %arg5[%c2_39, %c0_40] : memref<4x64xf32, #tpu.memory_space<vmem>>, vector<1x64xf32>
    %c2_41 = arith.constant 2 : index
    %c0_42 = arith.constant 0 : index
    %56 = vector.load %arg4[%c2_41, %c0_42] : memref<16x64xf32, #tpu.memory_space<vmem>>, vector<1x64xf32>
    %57 = vector.broadcast %56 : vector<1x64xf32> to vector<16x64xf32>
    %58 = arith.mulf %3, %57 : vector<16x64xf32>
    %59 = vector.broadcast %55 : vector<1x64xf32> to vector<16x64xf32>
    %60 = arith.addf %59, %58 : vector<16x64xf32>
    %c6 = arith.constant 6 : index
    %c0_43 = arith.constant 0 : index
    %61 = vector.load %arg4[%c6, %c0_43] : memref<16x64xf32, #tpu.memory_space<vmem>>, vector<1x64xf32>
    %62 = vector.broadcast %61 : vector<1x64xf32> to vector<16x64xf32>
    %63 = arith.mulf %6, %62 : vector<16x64xf32>
    %64 = arith.addf %60, %63 : vector<16x64xf32>
    %c10 = arith.constant 10 : index
    %c0_44 = arith.constant 0 : index
    %65 = vector.load %arg4[%c10, %c0_44] : memref<16x64xf32, #tpu.memory_space<vmem>>, vector<1x64xf32>
    %66 = vector.broadcast %65 : vector<1x64xf32> to vector<16x64xf32>
    %67 = arith.mulf %9, %66 : vector<16x64xf32>
    %68 = arith.addf %64, %67 : vector<16x64xf32>
    %c14 = arith.constant 14 : index
    %c0_45 = arith.constant 0 : index
    %69 = vector.load %arg4[%c14, %c0_45] : memref<16x64xf32, #tpu.memory_space<vmem>>, vector<1x64xf32>
    %70 = vector.broadcast %69 : vector<1x64xf32> to vector<16x64xf32>
    %71 = arith.mulf %12, %70 : vector<16x64xf32>
    %72 = arith.addf %68, %71 : vector<16x64xf32>
    %c0_46 = arith.constant 0 : index
    %c2_47 = arith.constant 2 : index
    %c0_48 = arith.constant 0 : index
    %c0_49 = arith.constant 0 : index
    %73 = vector.load %arg6[%c0_46, %c2_47, %c0_48, %c0_49] : memref<1x4x16x64xf32, #tpu.memory_space<vmem>>, vector<1x1x16x64xf32>
    %74 = vector.shape_cast %73 : vector<1x1x16x64xf32> to vector<16x64xf32>
    %75 = vector.shape_cast %72 : vector<16x64xf32> to vector<1x1x16x64xf32>
    tpu.vector_store %arg6[%c0_46, %c2_47, %c0_48, %c0_49], %75 {strides = array<i32>} : memref<1x4x16x64xf32, #tpu.memory_space<vmem>>, vector<1x1x16x64xf32>,
    %c3_50 = arith.constant 3 : index
    %c0_51 = arith.constant 0 : index
    %76 = vector.load %arg5[%c3_50, %c0_51] : memref<4x64xf32, #tpu.memory_space<vmem>>, vector<1x64xf32>
    %c3_52 = arith.constant 3 : index
    %c0_53 = arith.constant 0 : index
    %77 = vector.load %arg4[%c3_52, %c0_53] : memref<16x64xf32, #tpu.memory_space<vmem>>, vector<1x64xf32>
    %78 = vector.broadcast %77 : vector<1x64xf32> to vector<16x64xf32>
    %79 = arith.mulf %3, %78 : vector<16x64xf32>
    %80 = vector.broadcast %76 : vector<1x64xf32> to vector<16x64xf32>
    %81 = arith.addf %80, %79 : vector<16x64xf32>
    %c7 = arith.constant 7 : index
    %c0_54 = arith.constant 0 : index
    %82 = vector.load %arg4[%c7, %c0_54] : memref<16x64xf32, #tpu.memory_space<vmem>>, vector<1x64xf32>
    %83 = vector.broadcast %82 : vector<1x64xf32> to vector<16x64xf32>
    %84 = arith.mulf %6, %83 : vector<16x64xf32>
    %85 = arith.addf %81, %84 : vector<16x64xf32>
    %c11 = arith.constant 11 : index
    %c0_55 = arith.constant 0 : index
    %86 = vector.load %arg4[%c11, %c0_55] : memref<16x64xf32, #tpu.memory_space<vmem>>, vector<1x64xf32>
    %87 = vector.broadcast %86 : vector<1x64xf32> to vector<16x64xf32>
    %88 = arith.mulf %9, %87 : vector<16x64xf32>
    %89 = arith.addf %85, %88 : vector<16x64xf32>
    %c15 = arith.constant 15 : index
    %c0_56 = arith.constant 0 : index
    %90 = vector.load %arg4[%c15, %c0_56] : memref<16x64xf32, #tpu.memory_space<vmem>>, vector<1x64xf32>
    %91 = vector.broadcast %90 : vector<1x64xf32> to vector<16x64xf32>
    %92 = arith.mulf %12, %91 : vector<16x64xf32>
    %93 = arith.addf %89, %92 : vector<16x64xf32>
    %c0_57 = arith.constant 0 : index
    %c3_58 = arith.constant 3 : index
    %c0_59 = arith.constant 0 : index
    %c0_60 = arith.constant 0 : index
    %94 = vector.load %arg6[%c0_57, %c3_58, %c0_59, %c0_60] : memref<1x4x16x64xf32, #tpu.memory_space<vmem>>, vector<1x1x16x64xf32>
    %95 = vector.shape_cast %94 : vector<1x1x16x64xf32> to vector<16x64xf32>
    %96 = vector.shape_cast %93 : vector<16x64xf32> to vector<1x1x16x64xf32>
    tpu.vector_store %arg6[%c0_57, %c3_58, %c0_59, %c0_60], %96 {strides = array<i32>} : memref<1x4x16x64xf32, #tpu.memory_space<vmem>>, vector<1x1x16x64xf32>,
    return
  }
  func.func @transform_0(%arg0: i32, %arg1: i32) -> (i32, i32, i32, i32) {
    %c0_i32 = arith.constant 0 : i32
    %c0_i32_0 = arith.constant 0 : i32
    %c0_i32_1 = arith.constant 0 : i32
    return %arg0, %c0_i32, %arg1, %c0_i32_0 : i32, i32, i32, i32
  }
  func.func @transform_1(%arg0: i32, %arg1: i32) -> (i32, i32) {
    %c0_i32 = arith.constant 0 : i32
    %c0_i32_0 = arith.constant 0 : i32
    %c0_i32_1 = arith.constant 0 : i32
    return %c0_i32, %c0_i32_0 : i32, i32
  }
  func.func @transform_2(%arg0: i32, %arg1: i32) -> (i32, i32) {
    %c0_i32 = arith.constant 0 : i32
    %c0_i32_0 = arith.constant 0 : i32
    %c0_i32_1 = arith.constant 0 : i32
    return %c0_i32, %c0_i32_0 : i32, i32
  }
  func.func @transform_3(%arg0: i32, %arg1: i32) -> (i32, i32) {
    %c0_i32 = arith.constant 0 : i32
    %c0_i32_0 = arith.constant 0 : i32
    %c0_i32_1 = arith.constant 0 : i32
    return %c0_i32, %c0_i32_0 : i32, i32
  }
  func.func @transform_4(%arg0: i32, %arg1: i32) -> (i32, i32, i32, i32) {
    %c0_i32 = arith.constant 0 : i32
    %c0_i32_0 = arith.constant 0 : i32
    %c0_i32_1 = arith.constant 0 : i32
    return %arg0, %c0_i32, %arg1, %c0_i32_0 : i32, i32, i32, i32
  }
}

</mosaic_0001>

<llo_original>
// kernel: upsample_conv_transpose2d.1
$region0: #{upsample_conv_transpose2d.1}
  #allocation0 [shape = 'u32[]', space=smem, size = 0x4, offset = 0x4, fixed_abs, tag = 'smem constant byte address 0x4 - core index']
  #allocation1 [shape = 'u32[72,128]{1,0:T(1,128)}', space=vmem, size = 0x9000, scoped, tag = 'internal scratch']
  %s0 = inlined_call_operand.vmem [shape: f32[2,4,16,16], index: 0, kind: input, shape index: {}]
  %s1 = inlined_call_operand.vmem [shape: f32[16,64], index: 1, kind: input, shape index: {}]
  %s2 = inlined_call_operand.vmem [shape: f32[16,64], index: 2, kind: input, shape index: {}]
  %s3 = inlined_call_operand.vmem [shape: f32[4,64], index: 3, kind: input, shape index: {}]
  %s4 = inlined_call_operand.vmem [shape: f32[2,4,16,64], index: 4, kind: output, shape index: {}]
  %s5 = sld [smem:[#allocation0]]
  $region49: #{upsample_conv_transpose2d.1} parent=0
    _
  %s7 = ssub.s32 1, %s5
  %s8 = scalar_select 0, %s7, %s5
  loop: start=0, step=1, limit=4
  $region2: #{upsample_conv_transpose2d.1} parent=0 // loop_pre_header
    _
  $region3: #{upsample_conv_transpose2d.1} parent=0 // loop_header
    %s10 = sphi 0, %s14
    %p11 = scmp.ge.s32.totalorder %s10, 4
    %s17 = sphi 0, %s29
    %s18 = sphi 0, %s25
    %s19 = sphi 0, %s17
    %s20 = sphi 0, %s18
    %s21 = sphi 0, %s19
    %s22 = sphi 0, %s20
    %s34 = sphi 0, %s36
    %s37 = sphi 0, %s34
    %s38 = sphi 0, %s37
    %s54 = sphi 0, %s38
    %s58 = sphi 0, %s58
    %s60 = sphi 0, %s58
    %s61 = sphi 0, %s60
    %s75 = sphi 0, %s61
    %s79 = sphi 0, %s79
    %s81 = sphi 0, %s79
    %s82 = sphi 0, %s81
    %s96 = sphi 0, %s82
    %s100 = sphi 0, %s100
    %s102 = sphi 0, %s100
    %s103 = sphi 0, %s102
    %s117 = sphi 0, %s103
    %s125 = sphi 0, %s127
    %s128 = sphi 0, %s125
    %s129 = sphi 0, %s128
    %s145 = sphi 0, %s129
  $region4: #{upsample_conv_transpose2d.1} parent=0 // loop_header_branch
    %13 = sbr.rel (%p11) target = $region8
  $region5: #{upsample_conv_transpose2d.1} parent=0 // loop_body
    %s15 = ssub.s32 %s10, 1
    %s16 = ssub.s32 %s10, 2
    %s23 = sadd.s32 1, %s18
    %p24 = scmp.ge.s32.totalorder %s23, 1
    %s25 = scalar_select %p24, 0, %s23
    %s26 = sadd.s32 1, %s17
    %s27 = scalar_select %p24, %s26, %s17
    %p28 = scmp.ge.s32.totalorder %s27, 2
    %s29 = scalar_select %p28, 0, %s27
    %s30 = ssub.s32 %s17, %s29
    %s31 = ssub.s32 %s18, %s25
    %s32 = sor.u32 %s30, %s31
    %p33 = scmp.eq.s32.totalorder %s32, 0
    %s35 = sadd.s32 %s34, 1
    %s36 = scalar_select %p33, %s34, %s35
    %p39 = pneg %p33
    %p40 = scmp.eq.s32.totalorder %s10, 1
    %p41 = por %p39, %p40
    %p42 = scmp.ne.s32.totalorder %s34, %s37
    %p43 = scmp.eq.s32.totalorder %s10, 0
    %p44 = por %p42, %p43
    %p45 = scmp.ne.s32.totalorder %s34, %s37
    %p46 = scmp.eq.s32.totalorder %s15, 1
    %p47 = por %p45, %p46
    %p48 = scmp.ne.s32.totalorder %s37, %s38
    %p49 = scmp.eq.s32.totalorder %s15, 0
    %p50 = por %p48, %p49
    %p51 = scmp.ne.s32.totalorder %s37, %s38
    %p52 = scmp.eq.s32.totalorder %s16, 1
    %p53 = por %p51, %p52
    %p55 = scmp.ne.s32.totalorder %s38, %s54
    %p56 = scmp.eq.s32.totalorder %s16, 0
    %p57 = por %p55, %p56
    %s59 = sadd.s32 %s58, 1
    %p62 = scmp.eq.s32.totalorder %s10, 1
    %p63 = scmp.ne.s32.totalorder %s58, %s60
    %p64 = scmp.eq.s32.totalorder %s10, 0
    %p65 = por %p63, %p64
    %p66 = scmp.ne.s32.totalorder %s58, %s60
    %p67 = scmp.eq.s32.totalorder %s15, 1
    %p68 = por %p66, %p67
    %p69 = scmp.ne.s32.totalorder %s60, %s61
    %p70 = scmp.eq.s32.totalorder %s15, 0
    %p71 = por %p69, %p70
    %p72 = scmp.ne.s32.totalorder %s60, %s61
    %p73 = scmp.eq.s32.totalorder %s16, 1
    %p74 = por %p72, %p73
    %p76 = scmp.ne.s32.totalorder %s61, %s75
    %p77 = scmp.eq.s32.totalorder %s16, 0
    %p78 = por %p76, %p77
    %s80 = sadd.s32 %s79, 1
    %p83 = scmp.eq.s32.totalorder %s10, 1
    %p84 = scmp.ne.s32.totalorder %s79, %s81
    %p85 = scmp.eq.s32.totalorder %s10, 0
    %p86 = por %p84, %p85
    %p87 = scmp.ne.s32.totalorder %s79, %s81
    %p88 = scmp.eq.s32.totalorder %s15, 1
    %p89 = por %p87, %p88
    %p90 = scmp.ne.s32.totalorder %s81, %s82
    %p91 = scmp.eq.s32.totalorder %s15, 0
    %p92 = por %p90, %p91
    %p93 = scmp.ne.s32.totalorder %s81, %s82
    %p94 = scmp.eq.s32.totalorder %s16, 1
    %p95 = por %p93, %p94
    %p97 = scmp.ne.s32.totalorder %s82, %s96
    %p98 = scmp.eq.s32.totalorder %s16, 0
    %p99 = por %p97, %p98
    %s101 = sadd.s32 %s100, 1
    %p104 = scmp.eq.s32.totalorder %s10, 1
    %p105 = scmp.ne.s32.totalorder %s100, %s102
    %p106 = scmp.eq.s32.totalorder %s10, 0
    %p107 = por %p105, %p106
    %p108 = scmp.ne.s32.totalorder %s100, %s102
    %p109 = scmp.eq.s32.totalorder %s15, 1
    %p110 = por %p108, %p109
    %p111 = scmp.ne.s32.totalorder %s102, %s103
    %p112 = scmp.eq.s32.totalorder %s15, 0
    %p113 = por %p111, %p112
    %p114 = scmp.ne.s32.totalorder %s102, %s103
    %p115 = scmp.eq.s32.totalorder %s16, 1
    %p116 = por %p114, %p115
    %p118 = scmp.ne.s32.totalorder %s103, %s117
    %p119 = scmp.eq.s32.totalorder %s16, 0
    %p120 = por %p118, %p119
    %s121 = ssub.s32 %s17, %s29
    %s122 = ssub.s32 %s18, %s25
    %s123 = sor.u32 %s121, %s122
    %p124 = scmp.eq.s32.totalorder %s123, 0
    %s126 = sadd.s32 %s125, 1
    %s127 = scalar_select %p124, %s125, %s126
    %p130 = pneg %p124
    %p131 = scmp.eq.s32.totalorder %s10, 1
    %p132 = por %p130, %p131
    %p133 = scmp.ne.s32.totalorder %s125, %s128
    %p134 = scmp.eq.s32.totalorder %s10, 0
    %p135 = por %p133, %p134
    %p136 = scmp.ne.s32.totalorder %s125, %s128
    %p137 = scmp.eq.s32.totalorder %s15, 1
    %p138 = por %p136, %p137
    %p139 = scmp.ne.s32.totalorder %s128, %s129
    %p140 = scmp.eq.s32.totalorder %s15, 0
    %p141 = por %p139, %p140
    %p142 = scmp.ne.s32.totalorder %s128, %s129
    %p143 = scmp.eq.s32.totalorder %s16, 1
    %p144 = por %p142, %p143
    %p146 = scmp.ne.s32.totalorder %s129, %s145
    %p147 = scmp.eq.s32.totalorder %s16, 0
    %p148 = por %p146, %p147
    %p149 = scmp.le.s32.totalorder 1, %s10
    %p150 = scmp.lt.s32.totalorder %s10, 3
    %p151 = pnand %p149, %p150
    %p152 = pneg %p151
    // Predicated region
    $region9: #{upsample_conv_transpose2d.1} parent=5 // pred_check
      _
    $region10: #{upsample_conv_transpose2d.1} parent=5 // pred_check_branch
      %154 = sbr.rel (%p151) target = $region12
    $region11: #{upsample_conv_transpose2d.1} parent=5 // pred_region
      %s155 = ssub.s32 %s10, 1
      // Predicated region
      $region13: #{upsample_conv_transpose2d.1} parent=11 // pred_check
        %p156 = pneg %p71
      $region14: #{upsample_conv_transpose2d.1} parent=11 // pred_check_branch
        %158 = sbr.rel (%p156) target = $region16
      $region15: #{upsample_conv_transpose2d.1} parent=11 // pred_region
        _
      $region16: #{upsample_conv_transpose2d.1} parent=11 // pred_fallthru
        _
      // Predicated region
      $region17: #{upsample_conv_transpose2d.1} parent=11 // pred_check
        %p159 = pneg %p92
      $region18: #{upsample_conv_transpose2d.1} parent=11 // pred_check_branch
        %161 = sbr.rel (%p159) target = $region20
      $region19: #{upsample_conv_transpose2d.1} parent=11 // pred_region
        _
      $region20: #{upsample_conv_transpose2d.1} parent=11 // pred_fallthru
        _
      // Predicated region
      $region21: #{upsample_conv_transpose2d.1} parent=11 // pred_check
        %p162 = pneg %p113
      $region22: #{upsample_conv_transpose2d.1} parent=11 // pred_check_branch
        %164 = sbr.rel (%p162) target = $region24
      $region23: #{upsample_conv_transpose2d.1} parent=11 // pred_region
        _
      $region24: #{upsample_conv_transpose2d.1} parent=11 // pred_fallthru
        _
    $region12: #{upsample_conv_transpose2d.1} parent=5 // pred_fallthru
      _
    %p165 = scmp.lt.s32.totalorder %s10, 2
    // Predicated region
    $region25: #{upsample_conv_transpose2d.1} parent=5 // pred_check
      %p166 = pneg %p165
    $region26: #{upsample_conv_transpose2d.1} parent=5 // pred_check_branch
      %168 = sbr.rel (%p166) target = $region28
    $region27: #{upsample_conv_transpose2d.1} parent=5 // pred_region
      // Predicated region
      $region29: #{upsample_conv_transpose2d.1} parent=27 // pred_check
        %p169 = pneg %p44
      $region30: #{upsample_conv_transpose2d.1} parent=27 // pred_check_branch
        %171 = sbr.rel (%p169) target = $region32
      $region31: #{upsample_conv_transpose2d.1} parent=27 // pred_region
        %s172 = smul.u32 2, %s18
        %p173 = scmp.lt.s32.totalorder %s17, 1
        %s174 = scalar_select %p173, %s17, 1
        %p175 = scmp.lt.s32.totalorder %s172, 1
        %s176 = scalar_select %p175, %s172, 1
        %s177 = smul.addr %s174, 8
        %s178 = sadd.s32 %s176, %s177
        %s179 = smul.addr %s178, 8
        %s180 = scalar_lea.vmem %s0, %s179
        %s181 = smul.u32 2, %s18
      $region32: #{upsample_conv_transpose2d.1} parent=27 // pred_fallthru
        _
    $region28: #{upsample_conv_transpose2d.1} parent=5 // pred_fallthru
      _
    %p182 = scmp.le.s32.totalorder 1, %s10
    %p183 = scmp.lt.s32.totalorder %s10, 3
    %p184 = pnand %p182, %p183
    %p185 = pneg %p184
    // Predicated region
    $region33: #{upsample_conv_transpose2d.1} parent=5 // pred_check
      _
    $region34: #{upsample_conv_transpose2d.1} parent=5 // pred_check_branch
      %187 = sbr.rel (%p184) target = $region36
    $region35: #{upsample_conv_transpose2d.1} parent=5 // pred_region
      %s188 = ssub.s32 %s10, 1
      %s189 = smul.u32 2, %s20
      %p190 = scmp.lt.s32.totalorder %s19, 1
      %s191 = scalar_select %p190, %s19, 1
      %p192 = scmp.lt.s32.totalorder %s189, 1
      %s193 = scalar_select %p192, %s189, 1
      %s194 = smul.addr %s191, 8
      %s195 = sadd.s32 %s193, %s194
      %s196 = smul.addr %s195, 8
      %s197 = scalar_lea.vmem %s0, %s196
      %p198 = pneg %p50
      %p199 = pneg %p47
      %p200 = pneg %p71
      %p201 = pneg %p68
      %p202 = pneg %p92
      %p203 = pneg %p89
      %p204 = pneg %p113
      %p205 = pneg %p110
      %p206 = pneg %p141
      %p207 = pneg %p138
      %s208 = smul.u32 2, %s20
      %p209 = scmp.lt.s32.totalorder %s19, 1
      %s210 = scalar_select %p209, %s19, 1
      %p211 = scmp.lt.s32.totalorder %s208, 1
      %s212 = scalar_select %p211, %s208, 1
      %s213 = smul.addr %s210, 8
      %s214 = sadd.s32 %s212, %s213
      %s215 = smul.addr %s214, 8
      %s216 = scalar_lea.vmem %s4, %s215
      %s217 = smul.u32 2, %s20
      %p218 = scmp.lt.s32.totalorder %s19, 1
      %s219 = scalar_select %p218, %s19, 1
      %p220 = scmp.lt.s32.totalorder %s217, 1
      %s221 = scalar_select %p220, %s217, 1
      %s222 = smul.addr %s219, 8
      %s223 = sadd.s32 %s221, %s222
      %s224 = smul.addr %s223, 8
      %s225 = scalar_lea.vmem %s0, %s224
      %s226 = smul.u32 2, %s20
      %s227 = smul.u32 2, %s20
      %p228 = scmp.lt.s32.totalorder %s19, 1
      %s229 = scalar_select %p228, %s19, 1
      %p230 = scmp.lt.s32.totalorder %s227, 1
      %s231 = scalar_select %p230, %s227, 1
      %s232 = smul.addr %s229, 8
      %s233 = sadd.s32 %s231, %s232
      %s234 = smul.addr %s233, 8
      %s235 = scalar_lea.vmem %s4, %s234
      %s236 = smul.u32 2, %s20
      %v237 = vld [vmem:[%s1] sm:$0xff]
      %v238 = vld [vmem:[%s1 + $0x8] sm:$0xff]
      %v239 = vld [vmem:[%s225] sm:$0xff]
      %v240 = vld [vmem:[%s225 + $0x8] sm:$0xff]
      %vm241 = vcmask 130048
      %v243 = vsel %vm241, %v239, 0
      %v246 = vsel %vm241, %v240, 0
      %248 = vmatpush.msra.mxu0 0.0
      %249 = vmatpush.msra.mxu0 0.0
      %250 = vmatpush.msra.mxu0 0.0
      %251 = vmatpush.msra.mxu0 0.0
      %252 = vmatpush.msra.mxu0 0.0
      %253 = vmatpush.msra.mxu0 0.0
      %254 = vmatpush.msra.mxu0 0.0
      %255 = vmatpush.msra.mxu0 0.0
      %256 = vmatpush.msra.mxu0 0.0
      %257 = vmatpush.msra.mxu0 0.0
      %258 = vmatpush.msra.mxu0 0.0
      %259 = vmatpush.msra.mxu0 0.0
      %260 = vmatpush.msra.mxu0 0.0
      %261 = vmatpush.msra.mxu0 0.0
      %262 = vmatpush.msra.mxu0 %v238
      %263 = vmatpush.msra.mxu0 %v237
      %264 = vmatmul.f32.gmra.mxu0 %v243
      %v265 = vpop.f32.mrf.mxu0
      %v266 = vadd.f32 0.0, %v265
      %267 = vmatmul.f32.gmra.mxu0 %v246
      %v268 = vpop.f32.mrf.mxu0
      %v269 = vadd.f32 0.0, %v268
      %270 = vdwg.mxu0
      %s271 = scalar_lea.vmem %s225, 16
      %v272 = vld [vmem:[%s271] sm:$0xff]
      %v273 = vld [vmem:[%s271 + $0x8] sm:$0xff]
      %v275 = vsel %vm241, %v272, 0
      %v278 = vsel %vm241, %v273, 0
      %280 = vmatpush.msra.mxu0 0.0
      %281 = vmatpush.msra.mxu0 0.0
      %282 = vmatpush.msra.mxu0 0.0
      %283 = vmatpush.msra.mxu0 0.0
      %284 = vmatpush.msra.mxu0 0.0
      %285 = vmatpush.msra.mxu0 0.0
      %286 = vmatpush.msra.mxu0 0.0
      %287 = vmatpush.msra.mxu0 0.0
      %288 = vmatpush.msra.mxu0 0.0
      %289 = vmatpush.msra.mxu0 0.0
      %290 = vmatpush.msra.mxu0 0.0
      %291 = vmatpush.msra.mxu0 0.0
      %292 = vmatpush.msra.mxu0 0.0
      %293 = vmatpush.msra.mxu0 0.0
      %294 = vmatpush.msra.mxu0 %v238
      %295 = vmatpush.msra.mxu0 %v237
      %296 = vmatmul.f32.gmra.mxu0 %v275
      %v297 = vpop.f32.mrf.mxu0
      %v298 = vadd.f32 0.0, %v297
      %299 = vmatmul.f32.gmra.mxu0 %v278
      %v300 = vpop.f32.mrf.mxu0
      %v301 = vadd.f32 0.0, %v300
      %302 = vdwg.mxu0
      %s303 = scalar_lea.vmem %s225, 32
      %v304 = vld [vmem:[%s303] sm:$0xff]
      %v305 = vld [vmem:[%s303 + $0x8] sm:$0xff]
      %v307 = vsel %vm241, %v304, 0
      %v310 = vsel %vm241, %v305, 0
      %312 = vmatpush.msra.mxu0 0.0
      %313 = vmatpush.msra.mxu0 0.0
      %314 = vmatpush.msra.mxu0 0.0
      %315 = vmatpush.msra.mxu0 0.0
      %316 = vmatpush.msra.mxu0 0.0
      %317 = vmatpush.msra.mxu0 0.0
      %318 = vmatpush.msra.mxu0 0.0
      %319 = vmatpush.msra.mxu0 0.0
      %320 = vmatpush.msra.mxu0 0.0
      %321 = vmatpush.msra.mxu0 0.0
      %322 = vmatpush.msra.mxu0 0.0
      %323 = vmatpush.msra.mxu0 0.0
      %324 = vmatpush.msra.mxu0 0.0
      %325 = vmatpush.msra.mxu0 0.0
      %326 = vmatpush.msra.mxu0 %v238
      %327 = vmatpush.msra.mxu0 %v237
      %328 = vmatmul.f32.gmra.mxu0 %v307
      %v329 = vpop.f32.mrf.mxu0
      %v330 = vadd.f32 0.0, %v329
      %331 = vmatmul.f32.gmra.mxu0 %v310
      %v332 = vpop.f32.mrf.mxu0
      %v333 = vadd.f32 0.0, %v332
      %334 = vdwg.mxu0
      %s335 = scalar_lea.vmem %s225, 48
      %v336 = vld [vmem:[%s335] sm:$0xff]
      %v337 = vld [vmem:[%s335 + $0x8] sm:$0xff]
      %v339 = vsel %vm241, %v336, 0
      %v342 = vsel %vm241, %v337, 0
      %344 = vmatpush.msra.mxu0 0.0
      %345 = vmatpush.msra.mxu0 0.0
      %346 = vmatpush.msra.mxu0 0.0
      %347 = vmatpush.msra.mxu0 0.0
      %348 = vmatpush.msra.mxu0 0.0
      %349 = vmatpush.msra.mxu0 0.0
      %350 = vmatpush.msra.mxu0 0.0
      %351 = vmatpush.msra.mxu0 0.0
      %352 = vmatpush.msra.mxu0 0.0
      %353 = vmatpush.msra.mxu0 0.0
      %354 = vmatpush.msra.mxu0 0.0
      %355 = vmatpush.msra.mxu0 0.0
      %356 = vmatpush.msra.mxu0 0.0
      %357 = vmatpush.msra.mxu0 0.0
      %358 = vmatpush.msra.mxu0 %v238
      %359 = vmatpush.msra.mxu0 %v237
      %360 = vmatmul.f32.gmra.mxu0 %v339
      %v361 = vpop.f32.mrf.mxu0
      %v362 = vadd.f32 0.0, %v361
      %363 = vmatmul.f32.gmra.mxu0 %v342
      %v364 = vpop.f32.mrf.mxu0
      %v365 = vadd.f32 0.0, %v364
      %366 = vdwg.mxu0
      %v367 = vld [vmem:[%s3] sm:$0x1]
      %v368 = vld [vmem:[%s2] sm:$0x1]
      %v369 = vperm.slane %v368, 0
      %v370 = vmul.f32 %v266, %v369
      %v371 = vmul.f32 %v269, %v369
      %v372 = vperm.slane %v367, 0
      %v373 = vadd.f32 %v372, %v370
      %v374 = vadd.f32 %v372, %v371
      %v375 = vld [vmem:[%s2 + $0x4] sm:$0x1]
      %v376 = vperm.slane %v375, 0
      %v377 = vmul.f32 %v298, %v376
      %v378 = vmul.f32 %v301, %v376
      %v379 = vadd.f32 %v373, %v377
      %v380 = vadd.f32 %v374, %v378
      %v381 = vld [vmem:[%s2 + $0x8] sm:$0x1]
      %v382 = vperm.slane %v381, 0
      %v383 = vmul.f32 %v330, %v382
      %v384 = vmul.f32 %v333, %v382
      %v385 = vadd.f32 %v379, %v383
      %v386 = vadd.f32 %v380, %v384
      %v387 = vld [vmem:[%s2 + $0xc] sm:$0x1]
      %v388 = vperm.slane %v387, 0
      %v389 = vmul.f32 %v362, %v388
      %v390 = vmul.f32 %v365, %v388
      %v391 = vadd.f32 %v385, %v389
      %v392 = vadd.f32 %v386, %v390
      %vm393 = vcmask 523264
      %394 = vst.msk [vmem:[%s235] sm:$0xff] %vm393, %v391
      %395 = vst.msk [vmem:[%s235 + $0x8] sm:$0xff] %vm393, %v392
      %v396 = vld [vmem:[%s3 + $0x1] sm:$0x1]
      %v397 = vld [vmem:[%s2 + $0x1] sm:$0x1]
      %v398 = vperm.slane %v397, 0
      %v399 = vmul.f32 %v266, %v398
      %v400 = vmul.f32 %v269, %v398
      %v401 = vperm.slane %v396, 0
      %v402 = vadd.f32 %v401, %v399
      %v403 = vadd.f32 %v401, %v400
      %v404 = vld [vmem:[%s2 + $0x5] sm:$0x1]
      %v405 = vperm.slane %v404, 0
      %v406 = vmul.f32 %v298, %v405
      %v407 = vmul.f32 %v301, %v405
      %v408 = vadd.f32 %v402, %v406
      %v409 = vadd.f32 %v403, %v407
      %v410 = vld [vmem:[%s2 + $0x9] sm:$0x1]
      %v411 = vperm.slane %v410, 0
      %v412 = vmul.f32 %v330, %v411
      %v413 = vmul.f32 %v333, %v411
      %v414 = vadd.f32 %v408, %v412
      %v415 = vadd.f32 %v409, %v413
      %v416 = vld [vmem:[%s2 + $0xd] sm:$0x1]
      %v417 = vperm.slane %v416, 0
      %v418 = vmul.f32 %v362, %v417
      %v419 = vmul.f32 %v365, %v417
      %v420 = vadd.f32 %v414, %v418
      %v421 = vadd.f32 %v415, %v419
      %s422 = scalar_lea.vmem %s235, 16
      %423 = vst.msk [vmem:[%s422] sm:$0xff] %vm393, %v420
      %424 = vst.msk [vmem:[%s422 + $0x8] sm:$0xff] %vm393, %v421
      %v425 = vld [vmem:[%s3 + $0x2] sm:$0x1]
      %v426 = vld [vmem:[%s2 + $0x2] sm:$0x1]
      %v427 = vperm.slane %v426, 0
      %v428 = vmul.f32 %v266, %v427
      %v429 = vmul.f32 %v269, %v427
      %v430 = vperm.slane %v425, 0
      %v431 = vadd.f32 %v430, %v428
      %v432 = vadd.f32 %v430, %v429
      %v433 = vld [vmem:[%s2 + $0x6] sm:$0x1]
      %v434 = vperm.slane %v433, 0
      %v435 = vmul.f32 %v298, %v434
      %v436 = vmul.f32 %v301, %v434
      %v437 = vadd.f32 %v431, %v435
      %v438 = vadd.f32 %v432, %v436
      %v439 = vld [vmem:[%s2 + $0xa] sm:$0x1]
      %v440 = vperm.slane %v439, 0
      %v441 = vmul.f32 %v330, %v440
      %v442 = vmul.f32 %v333, %v440
      %v443 = vadd.f32 %v437, %v441
      %v444 = vadd.f32 %v438, %v442
      %v445 = vld [vmem:[%s2 + $0xe] sm:$0x1]
      %v446 = vperm.slane %v445, 0
      %v447 = vmul.f32 %v362, %v446
      %v448 = vmul.f32 %v365, %v446
      %v449 = vadd.f32 %v443, %v447
      %v450 = vadd.f32 %v444, %v448
      %s451 = scalar_lea.vmem %s235, 32
      %452 = vst.msk [vmem:[%s451] sm:$0xff] %vm393, %v449
      %453 = vst.msk [vmem:[%s451 + $0x8] sm:$0xff] %vm393, %v450
      %v454 = vld [vmem:[%s3 + $0x3] sm:$0x1]
      %v455 = vld [vmem:[%s2 + $0x3] sm:$0x1]
      %v456 = vperm.slane %v455, 0
      %v457 = vmul.f32 %v266, %v456
      %v458 = vmul.f32 %v269, %v456
      %v459 = vperm.slane %v454, 0
      %v460 = vadd.f32 %v459, %v457
      %v461 = vadd.f32 %v459, %v458
      %v462 = vld [vmem:[%s2 + $0x7] sm:$0x1]
      %v463 = vperm.slane %v462, 0
      %v464 = vmul.f32 %v298, %v463
      %v465 = vmul.f32 %v301, %v463
      %v466 = vadd.f32 %v460, %v464
      %v467 = vadd.f32 %v461, %v465
      %v468 = vld [vmem:[%s2 + $0xb] sm:$0x1]
      %v469 = vperm.slane %v468, 0
      %v470 = vmul.f32 %v330, %v469
      %v471 = vmul.f32 %v333, %v469
      %v472 = vadd.f32 %v466, %v470
      %v473 = vadd.f32 %v467, %v471
      %v474 = vld [vmem:[%s2 + $0xf] sm:$0x1]
      %v475 = vperm.slane %v474, 0
      %v476 = vmul.f32 %v362, %v475
      %v477 = vmul.f32 %v365, %v475
      %v478 = vadd.f32 %v472, %v476
      %v479 = vadd.f32 %v473, %v477
      %s480 = scalar_lea.vmem %s235, 48
      %481 = vst.msk [vmem:[%s480] sm:$0xff] %vm393, %v478
      %482 = vst.msk [vmem:[%s480 + $0x8] sm:$0xff] %vm393, %v479
      %s483 = smul.u32 2, %s20
      %p484 = scmp.lt.s32.totalorder %s19, 1
      %s485 = scalar_select %p484, %s19, 1
      %p486 = scmp.lt.s32.totalorder %s483, 1
      %s487 = scalar_select %p486, %s483, 1
      %s488 = smul.addr %s485, 8
      %s489 = sadd.s32 %s487, %s488
      %s490 = smul.addr %s489, 8
      %s491 = scalar_lea.vmem %s4, %s490
      // Predicated region
      $region37: #{upsample_conv_transpose2d.1} parent=35 // pred_check
        %p492 = pneg %p138
      $region38: #{upsample_conv_transpose2d.1} parent=35 // pred_check_branch
        %494 = sbr.rel (%p492) target = $region40
      $region39: #{upsample_conv_transpose2d.1} parent=35 // pred_region
        %s495 = smul.u32 2, %s20
      $region40: #{upsample_conv_transpose2d.1} parent=35 // pred_fallthru
        _
    $region36: #{upsample_conv_transpose2d.1} parent=5 // pred_fallthru
      _
    %p496 = scmp.le.s32.totalorder 2, %s10
    // Predicated region
    $region41: #{upsample_conv_transpose2d.1} parent=5 // pred_check
      %p497 = pneg %p496
    $region42: #{upsample_conv_transpose2d.1} parent=5 // pred_check_branch
      %499 = sbr.rel (%p497) target = $region44
    $region43: #{upsample_conv_transpose2d.1} parent=5 // pred_region
      %s500 = ssub.s32 %s10, 2
      // Predicated region
      $region45: #{upsample_conv_transpose2d.1} parent=43 // pred_check
        %p501 = pneg %p144
      $region46: #{upsample_conv_transpose2d.1} parent=43 // pred_check_branch
        %503 = sbr.rel (%p501) target = $region48
      $region47: #{upsample_conv_transpose2d.1} parent=43 // pred_region
        %s504 = smul.u32 2, %s22
        %p505 = scmp.lt.s32.totalorder %s21, 1
        %s506 = scalar_select %p505, %s21, 1
        %p507 = scmp.lt.s32.totalorder %s504, 1
        %s508 = scalar_select %p507, %s504, 1
        %s509 = smul.addr %s506, 8
        %s510 = sadd.s32 %s508, %s509
        %s511 = smul.addr %s510, 8
        %s512 = scalar_lea.vmem %s4, %s511
      $region48: #{upsample_conv_transpose2d.1} parent=43 // pred_fallthru
        _
    $region44: #{upsample_conv_transpose2d.1} parent=5 // pred_fallthru
      _
  $region6: #{upsample_conv_transpose2d.1} parent=0 // loop_footer
    %s14 = sadd.s32 1, %s10
  $region7: #{upsample_conv_transpose2d.1} parent=0 // loop_footer_branch
    %9 = sbr.rel target = $region3
  $region8: #{upsample_conv_transpose2d.1} parent=0 // loop_exit
    _

</llo_original>
